<compile_context>
chip_gen: v6e
topology: v6e:2x2x1
jax: 0.10.0
libtpu: 0.0.40
codegen_flags: <defaults>
</compile_context>

<pallas_src>
import functools

import jax
import jax.numpy as jnp
from jax.experimental import pallas as pl
from jax.experimental.pallas import tpu as pltpu


def _stats_kernel_labels(x_ref, lab_ref, out_ref, *, num_classes, mask_pad):
    """One (batch, row-tile) block, integer-label path.

    x_ref  : (1, C, TH, L)  logits in the caller dtype (cast per class slab)
    lab_ref: (1, TH, L)     int32 labels (pad rows hold the value C -> no class)
    out_ref: (1, 1, 3C, L)  rows = [tp_c | sum_p_c | sum_t_c], f32 partial sums
    """
    C = num_classes

    # per-class logits slabs; index the ref per class (no full-tile copy pass)
    xs = [x_ref[0, c].astype(jnp.float32) for c in range(C)]
    m = xs[0]
    for c in range(1, C):
        m = jnp.maximum(m, xs[c])
    es = [jnp.exp(xs[c] - m) for c in range(C)]
    denom = es[0]
    for c in range(1, C):
        denom = denom + es[c]
    inv = pl.reciprocal(denom, approx=True)      # one EUP push per pixel, not a divide

    lab = lab_ref[0]
    valid = (lab < C).astype(jnp.float32) if mask_pad else None

    tp_rows, sp_rows, st_rows = [], [], []
    for c in range(C):
        p_c = es[c] * inv                        # softmax prob of class c, (TH, L)
        t_c = (lab == c).astype(jnp.float32)     # one-hot built in-registers
        p_m = p_c * valid if mask_pad else p_c
        tp_rows.append(jnp.sum(p_c * t_c, axis=0, keepdims=True))
        sp_rows.append(jnp.sum(p_m, axis=0, keepdims=True))
        st_rows.append(jnp.sum(t_c, axis=0, keepdims=True))
    # single lane-dense (3C, L) store instead of 3C masked single-row stores
    out_ref[0, 0] = jnp.concatenate(tp_rows + sp_rows + st_rows, axis=0)


def _stats_kernel_onehot(x_ref, t_ref, out_ref, *, num_classes, mask_pad):
    """One (batch, row-tile) block, one-hot target path.

    x_ref: (1, C, TH, L) logits; t_ref: (1, C, TH, L) one-hot (any dtype);
    out_ref: (1, 1, 3C, L) rows = [tp_c | sum_p_c | sum_t_c].
    """
    C = num_classes
    xs = [x_ref[0, c].astype(jnp.float32) for c in range(C)]
    m = xs[0]
    for c in range(1, C):
        m = jnp.maximum(m, xs[c])
    es = [jnp.exp(xs[c] - m) for c in range(C)]
    denom = es[0]
    for c in range(1, C):
        denom = denom + es[c]
    inv = pl.reciprocal(denom, approx=True)

    ts = [t_ref[0, c].astype(jnp.float32) for c in range(C)]
    if mask_pad:
        valid = ts[0]
        for c in range(1, C):
            valid = valid + ts[c]                # pad rows are all-zero one-hot

    tp_rows, sp_rows, st_rows = [], [], []
    for c in range(C):
        p_c = es[c] * inv
        p_m = p_c * valid if mask_pad else p_c
        tp_rows.append(jnp.sum(p_c * ts[c], axis=0, keepdims=True))
        sp_rows.append(jnp.sum(p_m, axis=0, keepdims=True))
        st_rows.append(jnp.sum(ts[c], axis=0, keepdims=True))
    out_ref[0, 0] = jnp.concatenate(tp_rows + sp_rows + st_rows, axis=0)


def _vmem_capacity_bytes():
    try:
        return int(pltpu.get_tpu_info().vmem_capacity_bytes)   # 64 MiB v7x, 128 MiB v5e/v6e
    except Exception:
        return 64 << 20                                        # conservative fallback


def _lane_dense_shape(H, W):
    """Flatten (H, W) -> (Hr, L) with L a multiple of 128 when possible.

    H, W are contiguous so the reshape is free. Prefer an Hr that keeps 8-row
    tiling legal (Hr % 8 == 0 or Hr <= 8)."""
    if W % 128 == 0:
        return H, W
    total = H * W
    fallback = None
    for L in (1024, 896, 768, 640, 512, 384, 256, 128):
        if total % L == 0:
            rows = total // L
            if rows % 8 == 0 or rows <= 8:
                return rows, L
            if fallback is None:
                fallback = (rows, L)
    return fallback if fallback is not None else (H, W)


def _pick_row_tile(Hr, L, C, x_itemsize, tgt_row_bytes, vmem_cap):
    """Choose (row_tile, padded_rows): row_tile divides padded_rows and the
    double-buffered inputs + in-kernel temporaries stay within ~40% of VMEM."""
    per_row = 2 * (C * L * x_itemsize + tgt_row_bytes) + (2 * C + 4) * L * 4
    budget = int(vmem_cap * 0.40)
    max_rows = max(8, (budget // max(1, per_row)) // 8 * 8)

    if Hr * per_row <= budget or Hr <= 8:
        return Hr, Hr                            # full row extent per step (legal block)
    if Hr % 8 == 0:
        th = min(Hr, max_rows)
        while th > 8 and Hr % th != 0:
            th -= 8
        if Hr % th == 0:
            return th, Hr
    # awkward row count: pad up to a tile multiple; pad rows are masked in-kernel
    th = max_rows
    return th, ((Hr + th - 1) // th) * th


def mc_focal_tversky_loss(logits, target, *, alpha_t=0.7, beta_t=0.3,
                          gamma_f=4.0 / 3.0, smooth=1e-6, class_weights=None):
    """logits: (B, C, H, W); target: int labels (B, H, W) or one-hot (B, C, H, W)."""
    B, C, H, W = logits.shape
    labels_path = (target.ndim == 3)
    if not labels_path and target.shape != logits.shape:
        raise ValueError("one-hot target must match logits shape (B, C, H, W)")

    # lane-dense spatial flattening (free: H, W contiguous); no dtype upcasts here
    Hr, L = _lane_dense_shape(H, W)
    x = logits.reshape(B, C, Hr, L)
    if labels_path:
        # TODO(synk): the PyTorch reference applies an extra (buggy) permute(0,2,3,1)
        # after F.one_hot on the integer-label path; we implement the obviously
        # intended semantics (one-hot over a new channel axis, NCHW).
        t = target.astype(jnp.int32).reshape(B, Hr, L)
        tgt_row_bytes = L * 4
    else:
        t = target.reshape(B, C, Hr, L)
        tgt_row_bytes = C * L * t.dtype.itemsize

    vmem_cap = _vmem_capacity_bytes()
    TH, Hr_pad = _pick_row_tile(Hr, L, C, x.dtype.itemsize, tgt_row_bytes, vmem_cap)
    mask_pad = Hr_pad > Hr
    if mask_pad:
        pad = Hr_pad - Hr
        x = jnp.pad(x, ((0, 0), (0, 0), (0, pad), (0, 0)))
        if labels_path:
            t = jnp.pad(t, ((0, 0), (0, pad), (0, 0)), constant_values=C)  # no class
        else:
            t = jnp.pad(t, ((0, 0), (0, 0), (0, pad), (0, 0)))             # all-zero
    n_r = Hr_pad // TH
    if B == 1 and n_r == 1 and TH % 16 == 0:
        TH //= 2
        n_r = 2                                  # >= 2 grid steps for v7x megacore

    kernel = functools.partial(
        _stats_kernel_labels if labels_path else _stats_kernel_onehot,
        num_classes=C, mask_pad=mask_pad)

    if labels_path:
        tgt_spec = pl.BlockSpec((1, TH, L), lambda b, r: (b, r, 0))
        tgt_block_bytes = TH * L * 4
    else:
        tgt_spec = pl.BlockSpec((1, C, TH, L), lambda b, r: (b, 0, r, 0))
        tgt_block_bytes = C * TH * L * t.dtype.itemsize

    need = (2 * (C * TH * L * x.dtype.itemsize + tgt_block_bytes)
            + (2 * C + 4) * TH * L * 4 + 2 * 3 * C * L * 4)
    vmem_limit = int(min(vmem_cap - (4 << 20), max(need + (4 << 20), 32 << 20)))

    stats = pl.pallas_call(
        kernel,
        out_shape=jax.ShapeDtypeStruct((B, n_r, 3 * C, L), jnp.float32),
        grid=(B, n_r),
        in_specs=[pl.BlockSpec((1, C, TH, L), lambda b, r: (b, 0, r, 0)), tgt_spec],
        out_specs=pl.BlockSpec((1, 1, 3 * C, L), lambda b, r: (b, r, 0, 0)),
        compiler_params=pltpu.CompilerParams(
            dimension_semantics=("parallel", "parallel"),
            vmem_limit_bytes=vmem_limit),
    )(x, t)

    # fold (B, n_r, 3C, L) partial sums -> per-class scalars, then O(C) scalar math
    sums = jnp.sum(stats, axis=(0, 1, 3))
    tp, sp, st = sums[:C], sums[C:2 * C], sums[2 * C:]
    fp = sp - tp                                 # == sum((1 - t) * p)
    fn = st - tp                                 # == sum(t * (1 - p))
    tversky = (tp + smooth) / (tp + alpha_t * fn + beta_t * fp + smooth)
    base = jnp.maximum(1.0 - tversky, 0.0)       # guard tiny f32 negatives before pow
    focal = base ** gamma_f
    cw = (jnp.ones((C,), jnp.float32) if class_weights is None
          else jnp.asarray(class_weights, jnp.float32))
    return jnp.sum(cw * focal)


def _reference_loss(logits, labels, num_classes, alpha_t=0.7, beta_t=0.3,
                    gamma_f=4.0 / 3.0, smooth=1e-6):
    """Pure-JAX reference (intended semantics of the PyTorch module)."""
    p = jax.nn.softmax(logits.astype(jnp.float32), axis=1)
    t = jnp.transpose(jax.nn.one_hot(labels, num_classes, dtype=jnp.float32),
                      (0, 3, 1, 2))
    tp = jnp.sum(p * t, axis=(0, 2, 3))
    fp = jnp.sum((1.0 - t) * p, axis=(0, 2, 3))
    fn = jnp.sum(t * (1.0 - p), axis=(0, 2, 3))
    tv = (tp + smooth) / (tp + alpha_t * fn + beta_t * fp + smooth)
    return jnp.sum((1.0 - tv) ** gamma_f)


if __name__ == "__main__":
    key = jax.random.PRNGKey(0)
    B, C, H, W = 2, 4, 16, 16
    k1, k2 = jax.random.split(key)

    logits = jax.random.normal(k1, (B, C, H, W), jnp.float32)   # raw logits
    labels = jax.random.randint(k2, (B, H, W), 0, C)            # integer classes

    # integer-label path (optimized: no one-hot stream through HBM)
    loss = jax.jit(mc_focal_tversky_loss)(logits, labels)
    loss = jax.block_until_ready(loss)

    # one-hot path + pure-JAX reference sanity check
    onehot = jnp.transpose(jax.nn.one_hot(labels, C, dtype=jnp.float32), (0, 3, 1, 2))
    loss_oh = jax.block_until_ready(jax.jit(mc_focal_tversky_loss)(logits, onehot))
    ref = jax.block_until_ready(_reference_loss(logits, labels, C))

    tol = 1e-2 * max(1.0, abs(float(ref)))       # approx reciprocal -> loose tolerance
    assert bool(jnp.isfinite(loss))
    assert abs(float(loss) - float(ref)) <= tol
    assert abs(float(loss_oh) - float(ref)) <= tol
    print("KERNEL_OK")
</pallas_src>

<mosaic_0001>
module attributes {stable_mosaic.version = 11 : i64} {
  func.func @_stats_kernel_labels(%arg0: i32, %arg1: i32, %arg2: memref<1x4x1x256xf32, #tpu.memory_space<vmem>>, %arg3: memref<1x1x256xi32, #tpu.memory_space<vmem>>, %arg4: memref<1x1x12x256xf32, #tpu.memory_space<vmem>>) attributes {dimension_semantics = [#tpu.dimension_semantics<parallel>, #tpu.dimension_semantics<parallel>], iteration_bounds = array<i64: 2, 1>, scalar_prefetch = 0 : i64, scratch_operands = 0 : i64, tpu.core_type = #tpu.core_type<tc>, window_params = [{transform_indices = @transform_0, window_bounds = array<i64: 1, 4, 1, 256>}, {transform_indices = @transform_1, window_bounds = array<i64: 1, 1, 256>}, {transform_indices = @transform_2, window_bounds = array<i64: 1, 1, 12, 256>}]} {
    %c0 = arith.constant 0 : index
    %c0_0 = arith.constant 0 : index
    %c0_1 = arith.constant 0 : index
    %c0_2 = arith.constant 0 : index
    %0 = vector.load %arg2[%c0, %c0_0, %c0_1, %c0_2] : memref<1x4x1x256xf32, #tpu.memory_space<vmem>>, vector<1x1x1x256xf32>
    %1 = vector.shape_cast %0 : vector<1x1x1x256xf32> to vector<1x256xf32>
    %c0_3 = arith.constant 0 : index
    %c1 = arith.constant 1 : index
    %c0_4 = arith.constant 0 : index
    %c0_5 = arith.constant 0 : index
    %2 = vector.load %arg2[%c0_3, %c1, %c0_4, %c0_5] : memref<1x4x1x256xf32, #tpu.memory_space<vmem>>, vector<1x1x1x256xf32>
    %3 = vector.shape_cast %2 : vector<1x1x1x256xf32> to vector<1x256xf32>
    %c0_6 = arith.constant 0 : index
    %c2 = arith.constant 2 : index
    %c0_7 = arith.constant 0 : index
    %c0_8 = arith.constant 0 : index
    %4 = vector.load %arg2[%c0_6, %c2, %c0_7, %c0_8] : memref<1x4x1x256xf32, #tpu.memory_space<vmem>>, vector<1x1x1x256xf32>
    %5 = vector.shape_cast %4 : vector<1x1x1x256xf32> to vector<1x256xf32>
    %c0_9 = arith.constant 0 : index
    %c3 = arith.constant 3 : index
    %c0_10 = arith.constant 0 : index
    %c0_11 = arith.constant 0 : index
    %6 = vector.load %arg2[%c0_9, %c3, %c0_10, %c0_11] : memref<1x4x1x256xf32, #tpu.memory_space<vmem>>, vector<1x1x1x256xf32>
    %7 = vector.shape_cast %6 : vector<1x1x1x256xf32> to vector<1x256xf32>
    %8 = arith.maximumf %1, %3 : vector<1x256xf32>
    %9 = arith.maximumf %8, %5 : vector<1x256xf32>
    %10 = arith.maximumf %9, %7 : vector<1x256xf32>
    %11 = arith.subf %1, %10 : vector<1x256xf32>
    %12 = math.exp %11 : vector<1x256xf32>
    %13 = arith.subf %3, %10 : vector<1x256xf32>
    %14 = math.exp %13 : vector<1x256xf32>
    %15 = arith.subf %5, %10 : vector<1x256xf32>
    %16 = math.exp %15 : vector<1x256xf32>
    %17 = arith.subf %7, %10 : vector<1x256xf32>
    %18 = math.exp %17 : vector<1x256xf32>
    %19 = arith.addf %12, %14 : vector<1x256xf32>
    %20 = arith.addf %19, %16 : vector<1x256xf32>
    %21 = arith.addf %20, %18 : vector<1x256xf32>
    %22 = tpu.reciprocal %21 {approx = true} : vector<1x256xf32> -> vector<1x256xf32>
    %c0_12 = arith.constant 0 : index
    %c0_13 = arith.constant 0 : index
    %c0_14 = arith.constant 0 : index
    %23 = vector.load %arg3[%c0_12, %c0_13, %c0_14] : memref<1x1x256xi32, #tpu.memory_space<vmem>>, vector<1x1x256xi32>
    %24 = vector.shape_cast %23 : vector<1x1x256xi32> to vector<1x256xi32>
    %25 = arith.mulf %12, %22 : vector<1x256xf32>
    %c0_i32 = arith.constant 0 : i32
    %26 = vector.broadcast %c0_i32 : i32 to vector<1x256xi32>
    %27 = arith.cmpi eq, %24, %26 : vector<1x256xi32>
    %28 = arith.extui %27 : vector<1x256xi1> to vector<1x256xi32>
    %29 = arith.sitofp %28 : vector<1x256xi32> to vector<1x256xf32>
    %30 = arith.mulf %25, %29 : vector<1x256xf32>
    %cst = arith.constant dense<0.000000e+00> : vector<256xf32>
    %31 = vector.multi_reduction <add>, %30, %cst [0] : vector<1x256xf32> to vector<256xf32>
    %32 = vector.shape_cast %31 : vector<256xf32> to vector<1x256xf32>
    %cst_15 = arith.constant dense<0.000000e+00> : vector<256xf32>
    %33 = vector.multi_reduction <add>, %25, %cst_15 [0] : vector<1x256xf32> to vector<256xf32>
    %34 = vector.shape_cast %33 : vector<256xf32> to vector<1x256xf32>
    %cst_16 = arith.constant dense<0.000000e+00> : vector<256xf32>
    %35 = vector.multi_reduction <add>, %29, %cst_16 [0] : vector<1x256xf32> to vector<256xf32>
    %36 = vector.shape_cast %35 : vector<256xf32> to vector<1x256xf32>
    %37 = arith.mulf %14, %22 : vector<1x256xf32>
    %c1_i32 = arith.constant 1 : i32
    %38 = vector.broadcast %c1_i32 : i32 to vector<1x256xi32>
    %39 = arith.cmpi eq, %24, %38 : vector<1x256xi32>
    %40 = arith.extui %39 : vector<1x256xi1> to vector<1x256xi32>
    %41 = arith.sitofp %40 : vector<1x256xi32> to vector<1x256xf32>
    %42 = arith.mulf %37, %41 : vector<1x256xf32>
    %cst_17 = arith.constant dense<0.000000e+00> : vector<256xf32>
    %43 = vector.multi_reduction <add>, %42, %cst_17 [0] : vector<1x256xf32> to vector<256xf32>
    %44 = vector.shape_cast %43 : vector<256xf32> to vector<1x256xf32>
    %cst_18 = arith.constant dense<0.000000e+00> : vector<256xf32>
    %45 = vector.multi_reduction <add>, %37, %cst_18 [0] : vector<1x256xf32> to vector<256xf32>
    %46 = vector.shape_cast %45 : vector<256xf32> to vector<1x256xf32>
    %cst_19 = arith.constant dense<0.000000e+00> : vector<256xf32>
    %47 = vector.multi_reduction <add>, %41, %cst_19 [0] : vector<1x256xf32> to vector<256xf32>
    %48 = vector.shape_cast %47 : vector<256xf32> to vector<1x256xf32>
    %49 = arith.mulf %16, %22 : vector<1x256xf32>
    %c2_i32 = arith.constant 2 : i32
    %50 = vector.broadcast %c2_i32 : i32 to vector<1x256xi32>
    %51 = arith.cmpi eq, %24, %50 : vector<1x256xi32>
    %52 = arith.extui %51 : vector<1x256xi1> to vector<1x256xi32>
    %53 = arith.sitofp %52 : vector<1x256xi32> to vector<1x256xf32>
    %54 = arith.mulf %49, %53 : vector<1x256xf32>
    %cst_20 = arith.constant dense<0.000000e+00> : vector<256xf32>
    %55 = vector.multi_reduction <add>, %54, %cst_20 [0] : vector<1x256xf32> to vector<256xf32>
    %56 = vector.shape_cast %55 : vector<256xf32> to vector<1x256xf32>
    %cst_21 = arith.constant dense<0.000000e+00> : vector<256xf32>
    %57 = vector.multi_reduction <add>, %49, %cst_21 [0] : vector<1x256xf32> to vector<256xf32>
    %58 = vector.shape_cast %57 : vector<256xf32> to vector<1x256xf32>
    %cst_22 = arith.constant dense<0.000000e+00> : vector<256xf32>
    %59 = vector.multi_reduction <add>, %53, %cst_22 [0] : vector<1x256xf32> to vector<256xf32>
    %60 = vector.shape_cast %59 : vector<256xf32> to vector<1x256xf32>
    %61 = arith.mulf %18, %22 : vector<1x256xf32>
    %c3_i32 = arith.constant 3 : i32
    %62 = vector.broadcast %c3_i32 : i32 to vector<1x256xi32>
    %63 = arith.cmpi eq, %24, %62 : vector<1x256xi32>
    %64 = arith.extui %63 : vector<1x256xi1> to vector<1x256xi32>
    %65 = arith.sitofp %64 : vector<1x256xi32> to vector<1x256xf32>
    %66 = arith.mulf %61, %65 : vector<1x256xf32>
    %cst_23 = arith.constant dense<0.000000e+00> : vector<256xf32>
    %67 = vector.multi_reduction <add>, %66, %cst_23 [0] : vector<1x256xf32> to vector<256xf32>
    %68 = vector.shape_cast %67 : vector<256xf32> to vector<1x256xf32>
    %cst_24 = arith.constant dense<0.000000e+00> : vector<256xf32>
    %69 = vector.multi_reduction <add>, %61, %cst_24 [0] : vector<1x256xf32> to vector<256xf32>
    %70 = vector.shape_cast %69 : vector<256xf32> to vector<1x256xf32>
    %cst_25 = arith.constant dense<0.000000e+00> : vector<256xf32>
    %71 = vector.multi_reduction <add>, %65, %cst_25 [0] : vector<1x256xf32> to vector<256xf32>
    %72 = vector.shape_cast %71 : vector<256xf32> to vector<1x256xf32>
    %73 = tpu.concatenate %32, %44, %56, %68, %34, %46, %58, %70, %36, %48, %60, %72 in 0 : vector<1x256xf32>, vector<1x256xf32>, vector<1x256xf32>, vector<1x256xf32>, vector<1x256xf32>, vector<1x256xf32>, vector<1x256xf32>, vector<1x256xf32>, vector<1x256xf32>, vector<1x256xf32>, vector<1x256xf32>, vector<1x256xf32> -> vector<12x256xf32>
    %c0_26 = arith.constant 0 : index
    %c0_27 = arith.constant 0 : index
    %c0_28 = arith.constant 0 : index
    %c0_29 = arith.constant 0 : index
    %74 = vector.load %arg4[%c0_26, %c0_27, %c0_28, %c0_29] : memref<1x1x12x256xf32, #tpu.memory_space<vmem>>, vector<1x1x12x256xf32>
    %75 = vector.shape_cast %74 : vector<1x1x12x256xf32> to vector<12x256xf32>
    %76 = vector.shape_cast %73 : vector<12x256xf32> to vector<1x1x12x256xf32>
    tpu.vector_store %arg4[%c0_26, %c0_27, %c0_28, %c0_29], %76 {strides = array<i32>} : memref<1x1x12x256xf32, #tpu.memory_space<vmem>>, vector<1x1x12x256xf32>,
    return
  }
  func.func @transform_0(%arg0: i32, %arg1: i32) -> (i32, i32, i32, i32) {
    %c0_i32 = arith.constant 0 : i32
    %c0_i32_0 = arith.constant 0 : i32
    %c0_i32_1 = arith.constant 0 : i32
    return %arg0, %c0_i32, %arg1, %c0_i32_0 : i32, i32, i32, i32
  }
  func.func @transform_1(%arg0: i32, %arg1: i32) -> (i32, i32, i32) {
    %c0_i32 = arith.constant 0 : i32
    %c0_i32_0 = arith.constant 0 : i32
    return %arg0, %arg1, %c0_i32 : i32, i32, i32
  }
  func.func @transform_2(%arg0: i32, %arg1: i32) -> (i32, i32, i32, i32) {
    %c0_i32 = arith.constant 0 : i32
    %c0_i32_0 = arith.constant 0 : i32
    %c0_i32_1 = arith.constant 0 : i32
    return %arg0, %arg1, %c0_i32, %c0_i32_0 : i32, i32, i32, i32
  }
}

</mosaic_0001>

<llo_original>
// kernel: mc_focal_tversky_loss.1
$region0: #{mc_focal_tversky_loss.1}
  #allocation0 [shape = 'u32[]', space=smem, size = 0x4, offset = 0x4, fixed_abs, tag = 'smem constant byte address 0x4 - core index']
  #allocation1 [shape = 'u32[144,128]{1,0:T(1,128)}', space=vmem, size = 0x12000, scoped, tag = 'internal scratch']
  %s0 = inlined_call_operand.vmem [shape: f32[2,4,1,256], index: 0, kind: input, shape index: {}]
  %s1 = inlined_call_operand.vmem [shape: s32[2,1,256], index: 1, kind: input, shape index: {}]
  %s2 = inlined_call_operand.vmem [shape: f32[2,1,12,256], index: 2, kind: output, shape index: {}]
  %s3 = sld [smem:[#allocation0]]
  $region41: #{mc_focal_tversky_loss.1} parent=0
    _
  %s5 = ssub.s32 1, %s3
  %s6 = scalar_select 0, %s5, %s3
  loop: start=0, step=1, limit=4
  $region2: #{mc_focal_tversky_loss.1} parent=0 // loop_pre_header
    _
  $region3: #{mc_focal_tversky_loss.1} parent=0 // loop_header
    %s8 = sphi 0, %s12
    %p9 = scmp.ge.s32.totalorder %s8, 4
    %s15 = sphi 0, %s27
    %s16 = sphi 0, %s23
    %s17 = sphi 0, %s15
    %s18 = sphi 0, %s16
    %s19 = sphi 0, %s17
    %s20 = sphi 0, %s18
    %s32 = sphi 0, %s34
    %s35 = sphi 0, %s32
    %s36 = sphi 0, %s35
    %s52 = sphi 0, %s36
    %s60 = sphi 0, %s62
    %s63 = sphi 0, %s60
    %s64 = sphi 0, %s63
    %s80 = sphi 0, %s64
    %s88 = sphi 0, %s90
    %s91 = sphi 0, %s88
    %s92 = sphi 0, %s91
    %s108 = sphi 0, %s92
  $region4: #{mc_focal_tversky_loss.1} parent=0 // loop_header_branch
    %11 = sbr.rel (%p9) target = $region8
  $region5: #{mc_focal_tversky_loss.1} parent=0 // loop_body
    %s13 = ssub.s32 %s8, 1
    %s14 = ssub.s32 %s8, 2
    %s21 = sadd.s32 1, %s16
    %p22 = scmp.ge.s32.totalorder %s21, 1
    %s23 = scalar_select %p22, 0, %s21
    %s24 = sadd.s32 1, %s15
    %s25 = scalar_select %p22, %s24, %s15
    %p26 = scmp.ge.s32.totalorder %s25, 2
    %s27 = scalar_select %p26, 0, %s25
    %s28 = ssub.s32 %s15, %s27
    %s29 = ssub.s32 %s16, %s23
    %s30 = sor.u32 %s28, %s29
    %p31 = scmp.eq.s32.totalorder %s30, 0
    %s33 = sadd.s32 %s32, 1
    %s34 = scalar_select %p31, %s32, %s33
    %p37 = pneg %p31
    %p38 = scmp.eq.s32.totalorder %s8, 1
    %p39 = por %p37, %p38
    %p40 = scmp.ne.s32.totalorder %s32, %s35
    %p41 = scmp.eq.s32.totalorder %s8, 0
    %p42 = por %p40, %p41
    %p43 = scmp.ne.s32.totalorder %s32, %s35
    %p44 = scmp.eq.s32.totalorder %s13, 1
    %p45 = por %p43, %p44
    %p46 = scmp.ne.s32.totalorder %s35, %s36
    %p47 = scmp.eq.s32.totalorder %s13, 0
    %p48 = por %p46, %p47
    %p49 = scmp.ne.s32.totalorder %s35, %s36
    %p50 = scmp.eq.s32.totalorder %s14, 1
    %p51 = por %p49, %p50
    %p53 = scmp.ne.s32.totalorder %s36, %s52
    %p54 = scmp.eq.s32.totalorder %s14, 0
    %p55 = por %p53, %p54
    %s56 = ssub.s32 %s15, %s27
    %s57 = ssub.s32 %s16, %s23
    %s58 = sor.u32 %s56, %s57
    %p59 = scmp.eq.s32.totalorder %s58, 0
    %s61 = sadd.s32 %s60, 1
    %s62 = scalar_select %p59, %s60, %s61
    %p65 = pneg %p59
    %p66 = scmp.eq.s32.totalorder %s8, 1
    %p67 = por %p65, %p66
    %p68 = scmp.ne.s32.totalorder %s60, %s63
    %p69 = scmp.eq.s32.totalorder %s8, 0
    %p70 = por %p68, %p69
    %p71 = scmp.ne.s32.totalorder %s60, %s63
    %p72 = scmp.eq.s32.totalorder %s13, 1
    %p73 = por %p71, %p72
    %p74 = scmp.ne.s32.totalorder %s63, %s64
    %p75 = scmp.eq.s32.totalorder %s13, 0
    %p76 = por %p74, %p75
    %p77 = scmp.ne.s32.totalorder %s63, %s64
    %p78 = scmp.eq.s32.totalorder %s14, 1
    %p79 = por %p77, %p78
    %p81 = scmp.ne.s32.totalorder %s64, %s80
    %p82 = scmp.eq.s32.totalorder %s14, 0
    %p83 = por %p81, %p82
    %s84 = ssub.s32 %s15, %s27
    %s85 = ssub.s32 %s16, %s23
    %s86 = sor.u32 %s84, %s85
    %p87 = scmp.eq.s32.totalorder %s86, 0
    %s89 = sadd.s32 %s88, 1
    %s90 = scalar_select %p87, %s88, %s89
    %p93 = pneg %p87
    %p94 = scmp.eq.s32.totalorder %s8, 1
    %p95 = por %p93, %p94
    %p96 = scmp.ne.s32.totalorder %s88, %s91
    %p97 = scmp.eq.s32.totalorder %s8, 0
    %p98 = por %p96, %p97
    %p99 = scmp.ne.s32.totalorder %s88, %s91
    %p100 = scmp.eq.s32.totalorder %s13, 1
    %p101 = por %p99, %p100
    %p102 = scmp.ne.s32.totalorder %s91, %s92
    %p103 = scmp.eq.s32.totalorder %s13, 0
    %p104 = por %p102, %p103
    %p105 = scmp.ne.s32.totalorder %s91, %s92
    %p106 = scmp.eq.s32.totalorder %s14, 1
    %p107 = por %p105, %p106
    %p109 = scmp.ne.s32.totalorder %s92, %s108
    %p110 = scmp.eq.s32.totalorder %s14, 0
    %p111 = por %p109, %p110
    %p112 = scmp.le.s32.totalorder 1, %s8
    %p113 = scmp.lt.s32.totalorder %s8, 3
    %p114 = pnand %p112, %p113
    %p115 = pneg %p114
    // Predicated region
    $region9: #{mc_focal_tversky_loss.1} parent=5 // pred_check
      _
    $region10: #{mc_focal_tversky_loss.1} parent=5 // pred_check_branch
      %117 = sbr.rel (%p114) target = $region12
    $region11: #{mc_focal_tversky_loss.1} parent=5 // pred_region
      %s118 = ssub.s32 %s8, 1
    $region12: #{mc_focal_tversky_loss.1} parent=5 // pred_fallthru
      _
    %p119 = scmp.lt.s32.totalorder %s8, 2
    // Predicated region
    $region13: #{mc_focal_tversky_loss.1} parent=5 // pred_check
      %p120 = pneg %p119
    $region14: #{mc_focal_tversky_loss.1} parent=5 // pred_check_branch
      %122 = sbr.rel (%p120) target = $region16
    $region15: #{mc_focal_tversky_loss.1} parent=5 // pred_region
      // Predicated region
      $region17: #{mc_focal_tversky_loss.1} parent=15 // pred_check
        %p123 = pneg %p42
      $region18: #{mc_focal_tversky_loss.1} parent=15 // pred_check_branch
        %125 = sbr.rel (%p123) target = $region20
      $region19: #{mc_focal_tversky_loss.1} parent=15 // pred_region
        %p126 = scmp.lt.s32.totalorder %s15, 1
        %s127 = scalar_select %p126, %s15, 1
        %p128 = scmp.lt.s32.totalorder %s16, 0
        %s129 = scalar_select %p128, %s16, 0
        %s130 = smul.addr %s129, 2
        %s131 = smul.addr %s127, 8
        %s132 = sadd.s32 %s130, %s131
        %s133 = scalar_lea.vmem %s0, %s132
      $region20: #{mc_focal_tversky_loss.1} parent=15 // pred_fallthru
        _
      // Predicated region
      $region21: #{mc_focal_tversky_loss.1} parent=15 // pred_check
        %p134 = pneg %p70
      $region22: #{mc_focal_tversky_loss.1} parent=15 // pred_check_branch
        %136 = sbr.rel (%p134) target = $region24
      $region23: #{mc_focal_tversky_loss.1} parent=15 // pred_region
        %p137 = scmp.lt.s32.totalorder %s15, 1
        %s138 = scalar_select %p137, %s15, 1
        %p139 = scmp.lt.s32.totalorder %s16, 0
        %s140 = scalar_select %p139, %s16, 0
        %s141 = smul.addr %s140, 2
        %s142 = smul.addr %s138, 2
        %s143 = sadd.s32 %s141, %s142
        %s144 = scalar_lea.vmem %s1, %s143
      $region24: #{mc_focal_tversky_loss.1} parent=15 // pred_fallthru
        _
    $region16: #{mc_focal_tversky_loss.1} parent=5 // pred_fallthru
      _
    %p145 = scmp.le.s32.totalorder 1, %s8
    %p146 = scmp.lt.s32.totalorder %s8, 3
    %p147 = pnand %p145, %p146
    %p148 = pneg %p147
    // Predicated region
    $region25: #{mc_focal_tversky_loss.1} parent=5 // pred_check
      _
    $region26: #{mc_focal_tversky_loss.1} parent=5 // pred_check_branch
      %150 = sbr.rel (%p147) target = $region28
    $region27: #{mc_focal_tversky_loss.1} parent=5 // pred_region
      %s151 = ssub.s32 %s8, 1
      %p152 = scmp.lt.s32.totalorder %s17, 1
      %s153 = scalar_select %p152, %s17, 1
      %p154 = scmp.lt.s32.totalorder %s18, 0
      %s155 = scalar_select %p154, %s18, 0
      %s156 = smul.addr %s155, 2
      %s157 = smul.addr %s153, 8
      %s158 = sadd.s32 %s156, %s157
      %s159 = scalar_lea.vmem %s0, %s158
      %p160 = pneg %p48
      %p161 = pneg %p45
      %p162 = scmp.lt.s32.totalorder %s17, 1
      %s163 = scalar_select %p162, %s17, 1
      %p164 = scmp.lt.s32.totalorder %s18, 0
      %s165 = scalar_select %p164, %s18, 0
      %s166 = smul.addr %s165, 2
      %s167 = smul.addr %s163, 2
      %s168 = sadd.s32 %s166, %s167
      %s169 = scalar_lea.vmem %s1, %s168
      %p170 = pneg %p76
      %p171 = pneg %p73
      %p172 = pneg %p104
      %p173 = pneg %p101
      %p174 = scmp.lt.s32.totalorder %s17, 1
      %s175 = scalar_select %p174, %s17, 1
      %p176 = scmp.lt.s32.totalorder %s18, 0
      %s177 = scalar_select %p176, %s18, 0
      %s178 = smul.addr %s177, 4
      %s179 = smul.addr %s175, 4
      %s180 = sadd.s32 %s178, %s179
      %s181 = smul.addr %s180, 8
      %s182 = scalar_lea.vmem %s2, %s181
      %p183 = scmp.lt.s32.totalorder %s17, 1
      %s184 = scalar_select %p183, %s17, 1
      %p185 = scmp.lt.s32.totalorder %s18, 0
      %s186 = scalar_select %p185, %s18, 0
      %s187 = smul.addr %s186, 2
      %s188 = smul.addr %s184, 8
      %s189 = sadd.s32 %s187, %s188
      %s190 = scalar_lea.vmem %s0, %s189
      %p191 = scmp.lt.s32.totalorder %s17, 1
      %s192 = scalar_select %p191, %s17, 1
      %p193 = scmp.lt.s32.totalorder %s18, 0
      %s194 = scalar_select %p193, %s18, 0
      %s195 = smul.addr %s194, 2
      %s196 = smul.addr %s192, 2
      %s197 = sadd.s32 %s195, %s196
      %s198 = scalar_lea.vmem %s1, %s197
      %p199 = scmp.lt.s32.totalorder %s17, 1
      %s200 = scalar_select %p199, %s17, 1
      %p201 = scmp.lt.s32.totalorder %s18, 0
      %s202 = scalar_select %p201, %s18, 0
      %s203 = smul.addr %s202, 4
      %s204 = smul.addr %s200, 4
      %s205 = sadd.s32 %s203, %s204
      %s206 = smul.addr %s205, 8
      %s207 = scalar_lea.vmem %s2, %s206
      %v208 = vld [vmem:[%s190] sm:$0x3]
      %s209 = scalar_lea.vmem %s190, 2
      %v210 = vld [vmem:[%s209] sm:$0x3]
      %s211 = scalar_lea.vmem %s190, 4
      %v212 = vld [vmem:[%s211] sm:$0x3]
      %s213 = scalar_lea.vmem %s190, 6
      %v214 = vld [vmem:[%s213] sm:$0x3]
      %v215 = vmax.f32 %v208, %v210
      %v216 = vmax.f32 %v215, %v212
      %v217 = vmax.f32 %v216, %v214
      %v218 = vsub.f32 %v208, %v217
      %v219 = vmul.f32 %v218, 1.442695
      %v220 = vpow.pop %v219
      %v221 = vsub.f32 %v210, %v217
      %v222 = vmul.f32 %v221, 1.442695
      %v223 = vpow.pop %v222
      %v224 = vsub.f32 %v212, %v217
      %v225 = vmul.f32 %v224, 1.442695
      %v226 = vpow.pop %v225
      %v227 = vsub.f32 %v214, %v217
      %v228 = vmul.f32 %v227, 1.442695
      %v229 = vpow.pop %v228
      %v230 = vadd.f32 %v220, %v223
      %v231 = vadd.f32 %v230, %v226
      %v232 = vadd.f32 %v231, %v229
      %v233 = vrcp.pop %v232
      %v234 = vld [vmem:[%s198] sm:$0x3]
      %v235 = vmul.f32 %v220, %v233
      %vm236 = vcmp.eq.s32.totalorder %v234, 0
      %v237 = vsel %vm236, 1, 0
      %v238 = vcvt.s32.f32 %v237
      %v239 = vmul.f32 %v235, %v238
      %v240 = vadd.f32 %v239, 0.0
      %v241 = vadd.f32 %v235, 0.0
      %v242 = vadd.f32 %v238, 0.0
      %v243 = vmul.f32 %v223, %v233
      %vm244 = vcmp.eq.s32.totalorder %v234, 1
      %v245 = vsel %vm244, 1, 0
      %v246 = vcvt.s32.f32 %v245
      %v247 = vmul.f32 %v243, %v246
      %v248 = vadd.f32 %v247, 0.0
      %v249 = vadd.f32 %v243, 0.0
      %v250 = vadd.f32 %v246, 0.0
      %v251 = vmul.f32 %v226, %v233
      %vm252 = vcmp.eq.s32.totalorder %v234, 2
      %v253 = vsel %vm252, 1, 0
      %v254 = vcvt.s32.f32 %v253
      %v255 = vmul.f32 %v251, %v254
      %v256 = vadd.f32 %v255, 0.0
      %v257 = vadd.f32 %v251, 0.0
      %v258 = vadd.f32 %v254, 0.0
      %v259 = vmul.f32 %v229, %v233
      %vm260 = vcmp.eq.s32.totalorder %v234, 3
      %v261 = vsel %vm260, 1, 0
      %v262 = vcvt.s32.f32 %v261
      %v263 = vmul.f32 %v259, %v262
      %v264 = vadd.f32 %v263, 0.0
      %v265 = vadd.f32 %v259, 0.0
      %v266 = vadd.f32 %v262, 0.0
      %v268 = vlaneseq
      %v269 = vshrl.u32 %v268, 7
      %v270 = vsub.s32 0, %v269
      %v271 = vrot.slane %v240, %v270
      %v272 = vlaneseq
      %v273 = vshrl.u32 %v272, 7
      %v274 = vsub.s32 1, %v273
      %v275 = vrot.slane %v240, %v274
      %v279 = vlaneseq
      %v280 = vshrl.u32 %v279, 7
      %v281 = vsub.s32 0, %v280
      %v282 = vrot.slane %v248, %v281
      %v283 = vlaneseq
      %v284 = vshrl.u32 %v283, 7
      %v285 = vsub.s32 1, %v284
      %v286 = vrot.slane %v248, %v285
      %v290 = vlaneseq
      %v291 = vshrl.u32 %v290, 7
      %v292 = vsub.s32 0, %v291
      %v293 = vrot.slane %v256, %v292
      %v294 = vlaneseq
      %v295 = vshrl.u32 %v294, 7
      %v296 = vsub.s32 1, %v295
      %v297 = vrot.slane %v256, %v296
      %v301 = vlaneseq
      %v302 = vshrl.u32 %v301, 7
      %v303 = vsub.s32 0, %v302
      %v304 = vrot.slane %v264, %v303
      %v305 = vlaneseq
      %v306 = vshrl.u32 %v305, 7
      %v307 = vsub.s32 1, %v306
      %v308 = vrot.slane %v264, %v307
      %v312 = vlaneseq
      %v313 = vshrl.u32 %v312, 7
      %v314 = vsub.s32 0, %v313
      %v315 = vrot.slane %v241, %v314
      %v316 = vlaneseq
      %v317 = vshrl.u32 %v316, 7
      %v318 = vsub.s32 1, %v317
      %v319 = vrot.slane %v241, %v318
      %v323 = vlaneseq
      %v324 = vshrl.u32 %v323, 7
      %v325 = vsub.s32 0, %v324
      %v326 = vrot.slane %v249, %v325
      %v327 = vlaneseq
      %v328 = vshrl.u32 %v327, 7
      %v329 = vsub.s32 1, %v328
      %v330 = vrot.slane %v249, %v329
      %v334 = vlaneseq
      %v335 = vshrl.u32 %v334, 7
      %v336 = vsub.s32 0, %v335
      %v337 = vrot.slane %v257, %v336
      %v338 = vlaneseq
      %v339 = vshrl.u32 %v338, 7
      %v340 = vsub.s32 1, %v339
      %v341 = vrot.slane %v257, %v340
      %v345 = vlaneseq
      %v346 = vshrl.u32 %v345, 7
      %v347 = vsub.s32 0, %v346
      %v348 = vrot.slane %v265, %v347
      %v349 = vlaneseq
      %v350 = vshrl.u32 %v349, 7
      %v351 = vsub.s32 1, %v350
      %v352 = vrot.slane %v265, %v351
      %v356 = vlaneseq
      %v357 = vshrl.u32 %v356, 7
      %v358 = vsub.s32 0, %v357
      %v359 = vrot.slane %v242, %v358
      %v360 = vlaneseq
      %v361 = vshrl.u32 %v360, 7
      %v362 = vsub.s32 1, %v361
      %v363 = vrot.slane %v242, %v362
      %v367 = vlaneseq
      %v368 = vshrl.u32 %v367, 7
      %v369 = vsub.s32 0, %v368
      %v370 = vrot.slane %v250, %v369
      %v371 = vlaneseq
      %v372 = vshrl.u32 %v371, 7
      %v373 = vsub.s32 1, %v372
      %v374 = vrot.slane %v250, %v373
      %v378 = vlaneseq
      %v379 = vshrl.u32 %v378, 7
      %v380 = vsub.s32 0, %v379
      %v381 = vrot.slane %v258, %v380
      %v382 = vlaneseq
      %v383 = vshrl.u32 %v382, 7
      %v384 = vsub.s32 1, %v383
      %v385 = vrot.slane %v258, %v384
      %v389 = vlaneseq
      %v390 = vshrl.u32 %v389, 7
      %v391 = vsub.s32 0, %v390
      %v392 = vrot.slane %v266, %v391
      %v393 = vlaneseq
      %v394 = vshrl.u32 %v393, 7
      %v395 = vsub.s32 1, %v394
      %v396 = vrot.slane %v266, %v395
      %vm399 = vcmask 1040384
      %v400 = vsel %vm399, %v271, %v282
      %v401 = vsel %vm399, %v275, %v286
      %vm402 = vcmask 1041408
      %v403 = vsel %vm402, %v400, %v293
      %v404 = vsel %vm402, %v401, %v297
      %vm405 = vcmask 1042432
      %v406 = vsel %vm405, %v403, %v304
      %v407 = vsel %vm405, %v404, %v308
      %vm408 = vcmask 1043456
      %v409 = vsel %vm408, %v406, %v315
      %v410 = vsel %vm408, %v407, %v319
      %vm411 = vcmask 1044480
      %v412 = vsel %vm411, %v409, %v326
      %v413 = vsel %vm411, %v410, %v330
      %vm414 = vcmask 1045504
      %v415 = vsel %vm414, %v412, %v337
      %v416 = vsel %vm414, %v413, %v341
      %vm417 = vcmask 1046528
      %v418 = vsel %vm417, %v415, %v348
      %v419 = vsel %vm417, %v416, %v352
      %v420 = vsel %vm399, %v359, %v370
      %v421 = vsel %vm399, %v363, %v374
      %v422 = vsel %vm402, %v420, %v381
      %v423 = vsel %vm402, %v421, %v385
      %v424 = vsel %vm405, %v422, %v392
      %v425 = vsel %vm405, %v423, %v396
      %426 = vst [vmem:[%s207] sm:$0xff] %v418
      %427 = vst [vmem:[%s207 + $0x8] sm:$0xff] %v419
      %428 = vst [vmem:[%s207 + $0x10] sm:$0xf] %v424
      %429 = vst [vmem:[%s207 + $0x18] sm:$0xf] %v425
      %p430 = scmp.lt.s32.totalorder %s17, 1
      %s431 = scalar_select %p430, %s17, 1
      %p432 = scmp.lt.s32.totalorder %s18, 0
      %s433 = scalar_select %p432, %s18, 0
      %s434 = smul.addr %s433, 4
      %s435 = smul.addr %s431, 4
      %s436 = sadd.s32 %s434, %s435
      %s437 = smul.addr %s436, 8
      %s438 = scalar_lea.vmem %s2, %s437
      // Predicated region
      $region29: #{mc_focal_tversky_loss.1} parent=27 // pred_check
        %p439 = pneg %p101
      $region30: #{mc_focal_tversky_loss.1} parent=27 // pred_check_branch
        %441 = sbr.rel (%p439) target = $region32
      $region31: #{mc_focal_tversky_loss.1} parent=27 // pred_region
        _
      $region32: #{mc_focal_tversky_loss.1} parent=27 // pred_fallthru
        _
    $region28: #{mc_focal_tversky_loss.1} parent=5 // pred_fallthru
      _
    %p442 = scmp.le.s32.totalorder 2, %s8
    // Predicated region
    $region33: #{mc_focal_tversky_loss.1} parent=5 // pred_check
      %p443 = pneg %p442
    $region34: #{mc_focal_tversky_loss.1} parent=5 // pred_check_branch
      %445 = sbr.rel (%p443) target = $region36
    $region35: #{mc_focal_tversky_loss.1} parent=5 // pred_region
      %s446 = ssub.s32 %s8, 2
      // Predicated region
      $region37: #{mc_focal_tversky_loss.1} parent=35 // pred_check
        %p447 = pneg %p107
      $region38: #{mc_focal_tversky_loss.1} parent=35 // pred_check_branch
        %449 = sbr.rel (%p447) target = $region40
      $region39: #{mc_focal_tversky_loss.1} parent=35 // pred_region
        %p450 = scmp.lt.s32.totalorder %s19, 1
        %s451 = scalar_select %p450, %s19, 1
        %p452 = scmp.lt.s32.totalorder %s20, 0
        %s453 = scalar_select %p452, %s20, 0
        %s454 = smul.addr %s453, 4
        %s455 = smul.addr %s451, 4
        %s456 = sadd.s32 %s454, %s455
        %s457 = smul.addr %s456, 8
        %s458 = scalar_lea.vmem %s2, %s457
      $region40: #{mc_focal_tversky_loss.1} parent=35 // pred_fallthru
        _
    $region36: #{mc_focal_tversky_loss.1} parent=5 // pred_fallthru
      _
  $region6: #{mc_focal_tversky_loss.1} parent=0 // loop_footer
    %s12 = sadd.s32 1, %s8
  $region7: #{mc_focal_tversky_loss.1} parent=0 // loop_footer_branch
    %7 = sbr.rel target = $region3
  $region8: #{mc_focal_tversky_loss.1} parent=0 // loop_exit
    _

</llo_original>
